<compile_context>
chip_gen: v7x
topology: tpu7x:2x2x1
jax: 0.10.0
libtpu: 0.0.40
codegen_flags: <defaults>
</compile_context>

<pallas_src>
import math

import jax
import jax.numpy as jnp
from jax.experimental import pallas as pl
from jax.experimental.pallas import tpu as pltpu

_EXP_HALF_PI = math.exp(math.pi / 2.0)  # Python-float constant, as in the torch code
_LANES = 128
_TARGET_BLOCK_BYTES = 4 << 20           # ~4 MiB per pipeline buffer


def _round_up(v: int, m: int) -> int:
    return ((v + m - 1) // m) * m


def _aarelu_kernel(alpha_ref, x_ref, o_ref):
    # Scalar prologue: computed once per grid step from the SMEM scalar.
    a = jnp.maximum(alpha_ref[0], jnp.float32(1e-4))   # clamp(alpha, min=1e-4)
    inv_a = jnp.float32(1.0) / a                       # scalar recip -> no per-elem divide
    cutoff = a * jnp.float32(_EXP_HALF_PI)             # a * exp(pi/2)
    two_a = jnp.float32(2.0) * a

    x = x_ref[...].astype(jnp.float32)                 # f32 compute (v5e has no bf16 EUP)
    xs = jnp.maximum(x, a)                             # log() domain guard (1 VALU op;
                                                       #  NaN in xs is never selected)
    roll = a * jnp.sin(jnp.log(xs * inv_a)) + a        # rolling part
    y = jnp.where(x > 0, x, jnp.float32(0.0))          # relu branch; where keeps NaN->0
    y = jnp.where(x >= a, roll, y)                     # rolling branch
    y = jnp.where(x >= cutoff, two_a, y)               # saturation branch
    o_ref[...] = y.astype(o_ref.dtype)


def aarelu(x: jax.Array, alpha: jax.Array) -> jax.Array:
    """Elementwise AAReLU. x: any shape (e.g. NCHW), alpha: scalar float32."""
    orig_shape = x.shape
    dtype = x.dtype
    n = math.prod(orig_shape) if orig_shape else 1
    itemsize = jnp.dtype(dtype).itemsize

    # Sublane tiling for packed dtypes (8 for f32, 16 for bf16, 32 for int8).
    sub = max(8, 32 // itemsize)

    rows = pl.cdiv(n, _LANES)
    padded = rows * _LANES                 # only the last <128-element tail is padded

    # Block rows: up to ~4 MiB/buffer, sublane-aligned, and at least 2 grid
    # steps whenever possible so both v7x TensorCores get work.
    tr_max = max(sub, ((_TARGET_BLOCK_BYTES // (_LANES * itemsize)) // sub) * sub)
    if rows <= sub:
        tr = rows                          # tiny tensor: single full-extent block
    else:
        tr = min(tr_max, _round_up(pl.cdiv(rows, 2), sub))
    grid = pl.cdiv(rows, tr)               # partial last block handled by Pallas

    xf = x.reshape(-1)
    if padded != n:
        # TODO(synk): truly unaligned n (not a multiple of 128) still costs a
        # whole-tensor pad + slice pass; a copy-free tail would need a manual
        # masked DMA epilogue.
        xf = jnp.pad(xf, (0, padded - n))  # pad values (0) take the relu branch -> 0
    xf = xf.reshape(rows, _LANES)

    alpha_arr = jnp.asarray(alpha, dtype=jnp.float32).reshape(1)

    tile_bytes = tr * _LANES * itemsize
    # Headroom for 2x double-buffered in + out tiles; stay below v7x's 64 MiB.
    vmem_limit = int(min(max(8 << 20, 6 * tile_bytes), 48 << 20))

    out = pl.pallas_call(
        _aarelu_kernel,
        out_shape=jax.ShapeDtypeStruct((rows, _LANES), dtype),
        grid_spec=pltpu.PrefetchScalarGridSpec(
            num_scalar_prefetch=1,                       # alpha -> SMEM
            grid=(grid,),
            in_specs=[pl.BlockSpec((tr, _LANES), lambda i, a_ref: (i, 0))],
            out_specs=pl.BlockSpec((tr, _LANES), lambda i, a_ref: (i, 0)),
        ),
        compiler_params=pltpu.CompilerParams(
            dimension_semantics=("parallel",),           # shard grid across v7x's 2 TCs
            vmem_limit_bytes=vmem_limit,
        ),
    )(alpha_arr, xf)

    out = out.reshape(-1)
    if padded != n:
        out = out[:n]
    return out.reshape(orig_shape)


def aarelu_reference(x, alpha):
    """Pure-JAX reference mirroring the PyTorch forward (f32 math)."""
    xf = x.astype(jnp.float32)
    a = jnp.maximum(jnp.float32(alpha), 1e-4)
    cutoff = a * _EXP_HALF_PI
    y = jnp.where(xf > 0, xf, jnp.zeros_like(xf))
    xs = jnp.where(xf < a, a, xf)
    roll = a * jnp.sin(jnp.log(xs / a)) + a
    y = jnp.where(xf >= a, roll, y)
    y = jnp.where(xf >= cutoff, 2.0 * a, y)
    return y.astype(x.dtype)


if __name__ == "__main__":
    key = jax.random.PRNGKey(0)
    # deterministic parameter init, matching nn.Parameter(torch.tensor(6.0))
    alpha = jnp.float32(6.0)

    # Small NCHW input (128-aligned fast path, grid of 2 blocks).
    x = jax.random.normal(key, (2, 4, 16, 16), dtype=jnp.float32) * 8.0
    y = aarelu(x, alpha)
    jax.block_until_ready(y)
    y_ref = aarelu_reference(x, alpha)
    assert y.shape == x.shape and y.dtype == x.dtype
    assert jnp.allclose(y, y_ref, atol=1e-5, rtol=1e-5)

    # Unaligned shape exercises the tail pad/slice path.
    x2 = jax.random.normal(jax.random.PRNGKey(1), (3, 5, 7, 9), dtype=jnp.float32) * 8.0
    y2 = aarelu(x2, alpha)
    jax.block_until_ready(y2)
    assert y2.shape == x2.shape and y2.dtype == x2.dtype
    assert jnp.allclose(y2, aarelu_reference(x2, alpha), atol=1e-5, rtol=1e-5)

    # 128-aligned but not block-aligned: exercises the partial last block.
    x3 = jax.random.normal(jax.random.PRNGKey(3), (17, 128), dtype=jnp.float32) * 8.0
    y3 = aarelu(x3, alpha)
    jax.block_until_ready(y3)
    assert y3.shape == x3.shape and y3.dtype == x3.dtype
    assert jnp.allclose(y3, aarelu_reference(x3, alpha), atol=1e-5, rtol=1e-5)

    # Native bf16 I/O (f32 math inside the kernel).
    x4 = (jax.random.normal(jax.random.PRNGKey(2), (2, 4, 16, 16), dtype=jnp.float32) * 8.0
          ).astype(jnp.bfloat16)
    y4 = aarelu(x4, alpha)
    jax.block_until_ready(y4)
    assert y4.shape == x4.shape and y4.dtype == x4.dtype
    assert jnp.allclose(y4.astype(jnp.float32),
                        aarelu_reference(x4, alpha).astype(jnp.float32),
                        atol=1e-1, rtol=1e-2)

    print("KERNEL_OK")
</pallas_src>

<mosaic_0001>
module attributes {stable_mosaic.version = 11 : i64} {
  func.func @_aarelu_kernel(%arg0: i32, %arg1: memref<1xf32, #tpu.memory_space<smem>>, %arg2: memref<8x128xf32, #tpu.memory_space<vmem>>, %arg3: memref<8x128xf32, #tpu.memory_space<vmem>>) attributes {dimension_semantics = [#tpu.dimension_semantics<parallel>], iteration_bounds = array<i64: 2>, scalar_prefetch = 1 : i64, scratch_operands = 0 : i64, tpu.core_type = #tpu.core_type<tc>, window_params = [{transform_indices = @transform_0, window_bounds = array<i64: 8, 128>}, {transform_indices = @transform_1, window_bounds = array<i64: 8, 128>}]} {
    %c0 = arith.constant 0 : index
    %0 = memref.load %arg1[%c0] : memref<1xf32, #tpu.memory_space<smem>>
    %cst = arith.constant 9.99999974E-5 : f32
    %1 = arith.maximumf %0, %cst : f32
    %cst_0 = arith.constant 1.000000e+00 : f32
    %2 = arith.divf %cst_0, %1 : f32
    %cst_1 = arith.constant 4.81047726 : f32
    %3 = arith.mulf %1, %cst_1 : f32
    %cst_2 = arith.constant 2.000000e+00 : f32
    %4 = arith.mulf %cst_2, %1 : f32
    %c0_3 = arith.constant 0 : index
    %c0_4 = arith.constant 0 : index
    %5 = vector.load %arg2[%c0_3, %c0_4] : memref<8x128xf32, #tpu.memory_space<vmem>>, vector<8x128xf32>
    %6 = vector.broadcast %1 : f32 to vector<8x128xf32>
    %7 = arith.maximumf %5, %6 : vector<8x128xf32>
    %8 = vector.broadcast %2 : f32 to vector<8x128xf32>
    %9 = arith.mulf %7, %8 : vector<8x128xf32>
    %10 = math.log %9 : vector<8x128xf32>
    %11 = math.sin %10 : vector<8x128xf32>
    %12 = vector.broadcast %1 : f32 to vector<8x128xf32>
    %13 = arith.mulf %12, %11 : vector<8x128xf32>
    %14 = vector.broadcast %1 : f32 to vector<8x128xf32>
    %15 = arith.addf %13, %14 : vector<8x128xf32>
    %cst_5 = arith.constant 0.000000e+00 : f32
    %16 = vector.broadcast %cst_5 : f32 to vector<8x128xf32>
    %17 = arith.cmpf ogt, %5, %16 : vector<8x128xf32>
    %cst_6 = arith.constant 0.000000e+00 : f32
    %18 = vector.broadcast %cst_6 : f32 to vector<8x128xf32>
    %19 = arith.select %17, %5, %18 : vector<8x128xi1>, vector<8x128xf32>
    %20 = vector.broadcast %1 : f32 to vector<8x128xf32>
    %21 = arith.cmpf oge, %5, %20 : vector<8x128xf32>
    %22 = arith.select %21, %15, %19 : vector<8x128xi1>, vector<8x128xf32>
    %23 = vector.broadcast %3 : f32 to vector<8x128xf32>
    %24 = arith.cmpf oge, %5, %23 : vector<8x128xf32>
    %25 = vector.broadcast %4 : f32 to vector<8x128xf32>
    %26 = arith.select %24, %25, %22 : vector<8x128xi1>, vector<8x128xf32>
    %c0_7 = arith.constant 0 : index
    %c0_8 = arith.constant 0 : index
    %27 = vector.load %arg3[%c0_7, %c0_8] : memref<8x128xf32, #tpu.memory_space<vmem>>, vector<8x128xf32>
    tpu.vector_store %arg3[%c0_7, %c0_8], %26 {strides = array<i32>} : memref<8x128xf32, #tpu.memory_space<vmem>>, vector<8x128xf32>,
    return
  }
  func.func @transform_0(%arg0: i32, %arg1: memref<1xf32, #tpu.memory_space<smem>>) -> (i32, i32) {
    %c0_i32 = arith.constant 0 : i32
    %c0_i32_0 = arith.constant 0 : i32
    return %arg0, %c0_i32 : i32, i32
  }
  func.func @transform_1(%arg0: i32, %arg1: memref<1xf32, #tpu.memory_space<smem>>) -> (i32, i32) {
    %c0_i32 = arith.constant 0 : i32
    %c0_i32_0 = arith.constant 0 : i32
    return %arg0, %c0_i32 : i32, i32
  }
}

</mosaic_0001>

<llo_original>
// kernel: tpu_custom_call.1
$region0: #{tpu_custom_call.1}
  #allocation0 [shape = 'u32[]', space=smem, size = 0x4, offset = 0x4, fixed_abs, tag = 'smem constant byte address 0x4 - core index']
  #allocation1 [shape = 'u32[144,128]{1,0:T(1,128)}', space=vmem, size = 0x12000, scoped, tag = 'internal scratch']
  #allocation2 [shape = 's32[1]{0}', space=sflag, size = 0x4, scoped, tag = 'scoped memory for tpu_custom_call.1']
  #allocation3 [shape = 'f32[1]{0:T(128)S(6)}', space=smem, size = 0x200, scoped, tag = 'prefetched SMEM operand 0']
  %s0 = inlined_call_operand.<no memory space> [shape: f32[1], index: 0, kind: input, shape index: {}]
  %s1 = inlined_call_operand.hbm [shape: f32[16,128], index: 1, kind: input, shape index: {}]
  %s2 = inlined_call_operand.hbm [shape: f32[16,128], index: 2, kind: output, shape index: {}]
  %s3 = sld [smem:[#allocation0]]
  $region41: #{tpu_custom_call.1} parent=0
    _
  %s5 = ssub.s32 1, %s3
  %s6 = scalar_select 0, %s5, %s3
  %7 = sst [smem:[#allocation3]] %s0
  $region1: #{tpu_custom_call.1} parent=0
    #allocation4 [shape = 'u8[8192]{0}', space=vmem, size = 0x2000, scoped, tag = 'input window, operand 1']
    #allocation5 [shape = 's32[2]{0}', space=sflag, size = 0x8, scoped, tag = 'scoped memory for tpu_custom_call.1']
    #allocation6 [shape = 's32[2]{0}', space=sflag, size = 0x8, scoped, tag = 'scoped memory for tpu_custom_call.1']
    #allocation7 [shape = 'u8[8192]{0}', space=vmem, size = 0x2000, scoped, tag = 'output window, operand 0']
    %8 = vsyncpa [#allocation5], 0
    %s9 = scalar_lea.sflag [#allocation5], 1
    %10 = vsyncpa %s9, 0
    %11 = vsyncpa [#allocation6], 0
    %s12 = scalar_lea.sflag [#allocation6], 1
    %13 = vsyncpa %s12, 0
    loop: start=0, step=1, limit=4
    $region2: #{tpu_custom_call.1} parent=1 // loop_pre_header
      _
    $region3: #{tpu_custom_call.1} parent=1 // loop_header
      %s15 = sphi 0, %s19
      %p16 = scmp.ge.s32.totalorder %s15, 4
      %s25 = sphi 0, %s27
      %s28 = sphi 0, %s25
      %s29 = sphi 0, %s28
      %s45 = sphi 0, %s29
      %s51 = sphi 0, %s53
      %s54 = sphi 0, %s51
      %s55 = sphi 0, %s54
      %s71 = sphi 0, %s55
    $region4: #{tpu_custom_call.1} parent=1 // loop_header_branch
      %18 = sbr.rel (%p16) target = $region8
    $region5: #{tpu_custom_call.1} parent=1 // loop_body
      %s20 = ssub.s32 %s15, 1
      %s21 = ssub.s32 %s15, 2
      %s22 = sadd.s32 %s15, 1
      %s23 = ssub.s32 %s15, %s22
      %p24 = scmp.eq.s32.totalorder %s23, 0
      %s26 = sadd.s32 %s25, 1
      %s27 = scalar_select %p24, %s25, %s26
      %p30 = pneg %p24
      %p31 = scmp.eq.s32.totalorder %s15, 1
      %p32 = por %p30, %p31
      %p33 = scmp.ne.s32.totalorder %s25, %s28
      %p34 = scmp.eq.s32.totalorder %s15, 0
      %p35 = por %p33, %p34
      %p36 = scmp.ne.s32.totalorder %s25, %s28
      %p37 = scmp.eq.s32.totalorder %s20, 1
      %p38 = por %p36, %p37
      %p39 = scmp.ne.s32.totalorder %s28, %s29
      %p40 = scmp.eq.s32.totalorder %s20, 0
      %p41 = por %p39, %p40
      %p42 = scmp.ne.s32.totalorder %s28, %s29
      %p43 = scmp.eq.s32.totalorder %s21, 1
      %p44 = por %p42, %p43
      %p46 = scmp.ne.s32.totalorder %s29, %s45
      %p47 = scmp.eq.s32.totalorder %s21, 0
      %p48 = por %p46, %p47
      %s49 = ssub.s32 %s15, %s22
      %p50 = scmp.eq.s32.totalorder %s49, 0
      %s52 = sadd.s32 %s51, 1
      %s53 = scalar_select %p50, %s51, %s52
      %p56 = pneg %p50
      %p57 = scmp.eq.s32.totalorder %s15, 1
      %p58 = por %p56, %p57
      %p59 = scmp.ne.s32.totalorder %s51, %s54
      %p60 = scmp.eq.s32.totalorder %s15, 0
      %p61 = por %p59, %p60
      %p62 = scmp.ne.s32.totalorder %s51, %s54
      %p63 = scmp.eq.s32.totalorder %s20, 1
      %p64 = por %p62, %p63
      %p65 = scmp.ne.s32.totalorder %s54, %s55
      %p66 = scmp.eq.s32.totalorder %s20, 0
      %p67 = por %p65, %p66
      %p68 = scmp.ne.s32.totalorder %s54, %s55
      %p69 = scmp.eq.s32.totalorder %s21, 1
      %p70 = por %p68, %p69
      %p72 = scmp.ne.s32.totalorder %s55, %s71
      %p73 = scmp.eq.s32.totalorder %s21, 0
      %p74 = por %p72, %p73
      %p75 = scmp.le.s32.totalorder 1, %s15
      %p76 = scmp.lt.s32.totalorder %s15, 3
      %p77 = pnand %p75, %p76
      %p78 = pneg %p77
      // Predicated region
      $region9: #{tpu_custom_call.1} parent=5 // pred_check
        _
      $region10: #{tpu_custom_call.1} parent=5 // pred_check_branch
        %80 = sbr.rel (%p77) target = $region12
      $region11: #{tpu_custom_call.1} parent=5 // pred_region
        %s81 = ssub.s32 %s15, 1
      $region12: #{tpu_custom_call.1} parent=5 // pred_fallthru
        _
      %p82 = scmp.lt.s32.totalorder %s15, 2
      // Predicated region
      $region13: #{tpu_custom_call.1} parent=5 // pred_check
        %p83 = pneg %p82
      $region14: #{tpu_custom_call.1} parent=5 // pred_check_branch
        %85 = sbr.rel (%p83) target = $region16
      $region15: #{tpu_custom_call.1} parent=5 // pred_region
        // Predicated region
        $region17: #{tpu_custom_call.1} parent=15 // pred_check
          %p86 = pneg %p35
        $region18: #{tpu_custom_call.1} parent=15 // pred_check_branch
          %88 = sbr.rel (%p86) target = $region20
        $region19: #{tpu_custom_call.1} parent=15 // pred_region
          %s89 = sand.u32 %s25, 1
          %s90 = scalar_lea.sflag [#allocation5], %s89
          %s91 = sand.u32 %s25, 1
          %s92 = smul.addr %s91, 8
          %s93 = scalar_lea.vmem [#allocation4], %s92
          %s95 = ssub.s32 128, 128
          %96 = vsyncadd %s90, %s95
          %s97 = smul.addr %s15, 128
          %s98 = scalar_lea.hbm %s1, %s97
          %s100 = sshll.u32 %s93, 4
          %s101 = int_to_ptr.vmem [resolvable:$true] %s100
          %103 = dma.hbm_to_vmem [thread:$0]  %s98, 128, %s101, %s90
        $region20: #{tpu_custom_call.1} parent=15 // pred_fallthru
          _
      $region16: #{tpu_custom_call.1} parent=5 // pred_fallthru
        _
      %p104 = scmp.le.s32.totalorder 1, %s15
      %p105 = scmp.lt.s32.totalorder %s15, 3
      %p106 = pnand %p104, %p105
      %p107 = pneg %p106
      // Predicated region
      $region21: #{tpu_custom_call.1} parent=5 // pred_check
        _
      $region22: #{tpu_custom_call.1} parent=5 // pred_check_branch
        %109 = sbr.rel (%p106) target = $region24
      $region23: #{tpu_custom_call.1} parent=5 // pred_region
        %s110 = ssub.s32 %s15, 1
        %s111 = sand.u32 %s28, 1
        %s112 = scalar_lea.sflag [#allocation5], %s111
        %s113 = sand.u32 %s28, 1
        %s114 = smul.addr %s113, 8
        %s115 = scalar_lea.vmem [#allocation4], %s114
        // Predicated region
        $region25: #{tpu_custom_call.1} parent=23 // pred_check
          %p116 = pneg %p41
        $region26: #{tpu_custom_call.1} parent=23 // pred_check_branch
          %118 = sbr.rel (%p116) target = $region28
        $region27: #{tpu_custom_call.1} parent=23 // pred_region
          %119 = dma.done %s112, 128
        $region28: #{tpu_custom_call.1} parent=23 // pred_fallthru
          _
        %s120 = sand.u32 %s28, 1
        %s121 = scalar_lea.sflag [#allocation5], %s120
        %s122 = sand.u32 %s28, 1
        %s123 = smul.addr %s122, 8
        %s124 = scalar_lea.vmem [#allocation4], %s123
        %p125 = pneg %p41
        %p126 = pneg %p38
        %p127 = pneg %p67
        %p128 = pneg %p64
        %s129 = sand.u32 %s54, 1
        %s130 = scalar_lea.sflag [#allocation6], %s129
        %s131 = sand.u32 %s54, 1
        %s132 = smul.addr %s131, 8
        %s133 = scalar_lea.vmem [#allocation7], %s132
        %s134 = sld [smem:[#allocation3]]
        %s135 = smax.f32 %s134, 0.0001
        %v136 = vstv %s135
        %v137 = vrcp.pop %v136
        %s138 = vtos %v137
        %s139 = smul.f32 %s135, 4.8104773
        %s140 = smul.f32 %s135, 2.0
        %v141 = vld [vmem:[%s115] sm:$0xff]
        %v142 = vstv %s135
        %v143 = vmax.f32 %v141, %v142
        %v144 = vstv %s138
        %v145 = vmul.f32 %v143, %v144
        %v146 = vlog2.pop %v145
        %v147 = vmul.f32 %v146, 0.6931472
        %v148 = vand.u32 2147483647, %v147
        %vm149 = vcmp.le.f32.partialorder %v148, 0.7853982
        %vm150 = vcmp.lt.s32.totalorder %v147, 0
        %v151 = vand.u32 %v147, 2139095040
        %v152 = vshrl.u32 %v151, 23
        %v153 = vsub.s32 %v152, 127
        %v154 = vand.u32 2147483647, %v147
        %v155 = vand.u32 %v154, 8388607
        %v156 = vor.u32 %v155, 8388608
        %v157 = vsub.s32 0, %v156
        %v158 = vadd.s32 %v153, 1
        %vm159 = vcmp.gt.s32.totalorder %v158, 0
        %v160 = vsel %vm159, %v158, 0
        %v161 = vshrl.u32 %v160, 5
        %v162 = vand.u32 %v160, 31
        %v163 = vsub.s32 32, %v162
        %v164 = vshrl.u32 683565275, %v163
        %v165 = vshll.u32 683565275, %v162
        %v166 = vshrl.u32 2475754826, %v163
        %v167 = vor.u32 %v165, %v166
        %v168 = vshll.u32 2475754826, %v162
        %v169 = vshrl.u32 2131351028, %v163
        %v170 = vor.u32 %v168, %v169
        %v171 = vshll.u32 2131351028, %v162
        %v172 = vshrl.u32 2102212464, %v163
        %v173 = vor.u32 %v171, %v172
        %v174 = vshll.u32 2102212464, %v162
        %v175 = vshrl.u32 920167782, %v163
        %v176 = vor.u32 %v174, %v175
        %v177 = vshll.u32 920167782, %v162
        %v178 = vshrl.u32 1326507024, %v163
        %v179 = vor.u32 %v177, %v178
        %vm180 = vcmp.lt.s32.totalorder %v161, 1
        %vm181 = vcmp.lt.s32.totalorder %v161, 2
        %vm182 = vcmp.lt.s32.totalorder %v161, 3
        %vm183 = vcmp.lt.s32.totalorder %v161, 4
        %v184 = vsel %vm180, %v164, %v167
        %v185 = vsel %vm183, %v173, 2102212464
        %v186 = vsel %vm182, %v170, %v185
        %v187 = vsel %vm181, %v184, %v186
        %v188 = vsel %vm180, %v167, %v170
        %v189 = vsel %vm183, %v176, 920167782
        %v190 = vsel %vm182, %v173, %v189
        %v191 = vsel %vm181, %v188, %v190
        %v192 = vsel %vm180, %v170, %v173
        %v193 = vsel %vm183, %v179, 1326507024
        %v194 = vsel %vm182, %v176, %v193
        %v195 = vsel %vm181, %v192, %v194
        %v196 = vshll.u32 %v156, 8
        %v197 = vmul.u32.u64.compose %v196, %v195
        %v198 = vextract.low.u32 %v197
        %v199 = vextract.high.u32 %v197
        %v200 = vmul.u32.u64.compose %v196, %v191
        %v201 = vextract.low.u32 %v200
        %v202 = vextract.high.u32 %v200
        %v203 = vmul.u32 %v196, %v187
        %v204 = vadd.s32 %v199, %v201
        %vm205 = vc.u32 %v199, %v201
        %v206 = vadd.s32 %v202, 1
        %v207 = vsel %vm205, %v206, %v202
        %v208 = vadd.s32 %v203, %v207
        %v209 = vadd.s32 %v208, 536870912
        %v210 = vshrl.u32 %v209, 30
        %v211 = vshll.u32 %v210, 30
        %v212 = vsub.s32 %v208, %v211
        %vm213 = vcmp.lt.s32.totalorder %v212, 0
        %v214 = vsub.s32 0, %v212
        %v215 = vsel %vm213, %v214, %v212
        %v216 = vclz %v215
        %v217 = vsub.s32 %v216, 2
        %vm218 = vcmp.gt.s32.totalorder 0, %v217
        %v219 = vsel %vm218, 0, %v217
        %v220 = vsub.s32 32, %v219
        %v221 = vshll.u32 %v212, %v219
        %v222 = vshrl.u32 %v204, %v220
        %v223 = vor.u32 %v221, %v222
        %v224 = vsub.s32 4294967266, %v219
        %v225 = vadd.s32 %v224, 127
        %v226 = vshll.u32 %v225, 23
        %v227 = vor.u32 4788187, %v226
        %v228 = vand.u32 2147483647, %v227
        %v230 = vcvt.s32.f32 %v223
        %v231 = vmul.f32 %v230, %v228
        %v232 = vxor.u32 %v231, 2147483648
        %v233 = vsel %vm150, %v232, %v231
        %v234 = vsub.s32 4, %v210
        %v235 = vsel %vm150, %v234, %v210
        %v236 = vsel %vm149, %v147, %v233
        %v237 = vsel %vm149, 0, %v235
        %v238 = vcosq.f32.pop %v236
        %v239 = vsinq.f32.pop %v236
        %vm240 = vweird.f32 %v147
        %v241 = vadd.s32 %v237, 3
        %v242 = vand.u32 %v241, 3
        %vm243 = vcmp.lt.s32.totalorder %v242, 2
        %vm244 = vcmp.eq.s32.totalorder %v242, 0
        %v245 = vxor.u32 %v239, 2147483648
        %v246 = vsel %vm244, %v238, %v245
        %vm247 = vcmp.eq.s32.totalorder %v242, 2
        %v248 = vxor.u32 %v238, 2147483648
        %v249 = vsel %vm247, %v248, %v239
        %v250 = vsel %vm243, %v246, %v249
        %v251 = vsel %vm240, nan, %v250
        %v252 = vmul.f32 %v142, %v251
        %v253 = vadd.f32 %v252, %v142
        %vm254 = vcmp.gt.f32.partialorder %v141, 0.0
        %v255 = vsel %vm254, %v141, 0.0
        %vm256 = vcmp.ge.f32.partialorder %v141, %v142
        %v257 = vsel %vm256, %v253, %v255
        %v258 = vstv %s139
        %vm259 = vcmp.ge.f32.partialorder %v141, %v258
        %v260 = vstv %s140
        %v261 = vsel %vm259, %v260, %v257
        %262 = vst [vmem:[%s133] sm:$0xff] %v261
        %s263 = sand.u32 %s54, 1
        %s264 = scalar_lea.sflag [#allocation6], %s263
        %s265 = sand.u32 %s54, 1
        %s266 = smul.addr %s265, 8
        %s267 = scalar_lea.vmem [#allocation7], %s266
        // Predicated region
        $region29: #{tpu_custom_call.1} parent=23 // pred_check
          %p268 = pneg %p64
        $region30: #{tpu_custom_call.1} parent=23 // pred_check_branch
          %270 = sbr.rel (%p268) target = $region32
        $region31: #{tpu_custom_call.1} parent=23 // pred_region
          %s272 = ssub.s32 128, 128
          %273 = vsyncadd %s264, %s272
          %s274 = smul.addr %s20, 128
          %s275 = scalar_lea.hbm %s2, %s274
          %s277 = sshll.u32 %s267, 4
          %s278 = int_to_ptr.vmem [resolvable:$true] %s277
          %280 = dma.vmem_to_hbm [thread:$0]  %s278, 128, %s275, %s264
        $region32: #{tpu_custom_call.1} parent=23 // pred_fallthru
          _
      $region24: #{tpu_custom_call.1} parent=5 // pred_fallthru
        _
      %p281 = scmp.le.s32.totalorder 2, %s15
      // Predicated region
      $region33: #{tpu_custom_call.1} parent=5 // pred_check
        %p282 = pneg %p281
      $region34: #{tpu_custom_call.1} parent=5 // pred_check_branch
        %284 = sbr.rel (%p282) target = $region36
      $region35: #{tpu_custom_call.1} parent=5 // pred_region
        %s285 = ssub.s32 %s15, 2
        // Predicated region
        $region37: #{tpu_custom_call.1} parent=35 // pred_check
          %p286 = pneg %p70
        $region38: #{tpu_custom_call.1} parent=35 // pred_check_branch
          %288 = sbr.rel (%p286) target = $region40
        $region39: #{tpu_custom_call.1} parent=35 // pred_region
          %s289 = sand.u32 %s55, 1
          %s290 = scalar_lea.sflag [#allocation6], %s289
          %s291 = sand.u32 %s55, 1
          %s292 = smul.addr %s291, 8
          %s293 = scalar_lea.vmem [#allocation7], %s292
          %294 = dma.done %s290, 128
        $region40: #{tpu_custom_call.1} parent=35 // pred_fallthru
          _
      $region36: #{tpu_custom_call.1} parent=5 // pred_fallthru
        _
    $region6: #{tpu_custom_call.1} parent=1 // loop_footer
      %s19 = sadd.s32 1, %s15
    $region7: #{tpu_custom_call.1} parent=1 // loop_footer_branch
      %14 = sbr.rel target = $region3
    $region8: #{tpu_custom_call.1} parent=1 // loop_exit
      _
    %295 = vsyncpa [#allocation5], 1
    %s296 = scalar_lea.sflag [#allocation5], 1
    %297 = vsyncpa %s296, 1
    %298 = vsyncpa [#allocation6], 1
    %s299 = scalar_lea.sflag [#allocation6], 1
    %300 = vsyncpa %s299, 1

</llo_original>
